<compile_context>
chip_gen: v7x
topology: tpu7x:2x2x1
jax: 0.10.0
libtpu: 0.0.40
codegen_flags: <defaults>
</compile_context>

<pallas_src>
import functools

import jax
import jax.numpy as jnp
from jax.experimental import pallas as pl
from jax.experimental.pallas import tpu as pltpu


def _wce_kernel(hw, logit_ref, tgt_ref, w_ref, loss_ref, wsum_ref):
    """One (lane-tile, batch) block of weighted cross entropy.

    logit_ref : (1, C, TW)   logits tile, class on sublanes, pixels on lanes
    tgt_ref   : (1, 1, TW)   int32 target class per pixel
    w_ref     : (C, 1)       float32 per-class weights
    loss_ref  : (1, 1, 1, 1) per-tile sum of w[t] * nll
    wsum_ref  : (1, 1, 1, 1) per-tile sum of w[t]
    """
    tw = logit_ref.shape[-1]

    x = logit_ref[0].astype(jnp.float32)      # (C, TW)  cast in-kernel, not HBM
    tgt = tgt_ref[0]                          # (1, TW)  int32
    w = w_ref[...]                            # (C, 1)   float32

    # Numerically stable log-sum-exp over the class (sublane) axis.
    m = jnp.max(x, axis=0, keepdims=True)                              # (1, TW)
    lse = jnp.log(jnp.sum(jnp.exp(x - m), axis=0, keepdims=True)) + m  # (1, TW)

    # One-hot over classes; pull the target logit and its weight with it.
    # Out-of-range targets match no class -> weight 0, excluded from both sums.
    cls = jax.lax.broadcasted_iota(jnp.int32, x.shape, 0)              # (C, TW)
    onehot = cls == tgt                                                # (C, TW)
    tgt_logit = jnp.sum(jnp.where(onehot, x, 0.0), axis=0, keepdims=True)
    w_sel = jnp.sum(jnp.where(onehot, w, 0.0), axis=0, keepdims=True)  # (1, TW)

    part = w_sel * (lse - tgt_logit)                                   # (1, TW)

    # Ragged last tile: mask the *reduced* (1, TW) quantities with a select so
    # NaN/Inf from uninitialized out-of-range lanes cannot poison the sums.
    # `hw` and `tw` are Python ints, so this whole branch disappears at trace
    # time when HW is a multiple of the tile width.
    if hw % tw != 0:
        t = pl.program_id(0)
        col = jax.lax.broadcasted_iota(jnp.int32, (1, tw), 1) + t * tw
        valid = col < hw
        part = jnp.where(valid, part, 0.0)
        w_sel = jnp.where(valid, w_sel, 0.0)

    loss_ref[...] = jnp.reshape(
        jnp.sum(part, axis=1, keepdims=True), (1, 1, 1, 1))
    wsum_ref[...] = jnp.reshape(
        jnp.sum(w_sel, axis=1, keepdims=True), (1, 1, 1, 1))


@jax.jit
def _wce_impl(logit, target, weight):
    N, C, H, W = logit.shape
    HW = H * W

    # Free reshapes only — no transpose in HBM.  (The int32 cast of the target
    # is a cheap copy only if targets arrive in a different integer dtype.)
    logits_3d = logit.reshape(N, C, HW)
    tgt_3d = target.reshape(N, 1, HW).astype(jnp.int32)
    w_2d = weight.reshape(C, 1).astype(jnp.float32)

    itemsize = jnp.dtype(logit.dtype).itemsize
    c_pad = ((C + 7) // 8) * 8

    # Lane-tile width from a VMEM byte budget (not an element count), so the
    # ~0.35 us/step grid overhead is amortized by MiB-scale blocks while the
    # working set stays inside every generation's VMEM (v7x: 64 MiB physical,
    # 48 MiB requested below).  Conservative per-lane accounting:
    per_lane_bytes = (
        2 * c_pad * itemsize   # double-buffered logits block (sublane-padded)
        + 4 * c_pad * 4        # (C, TW) f32/i32 temporaries (exp, one-hot, selects)
        + 2 * 8 * 4            # double-buffered int32 target block (padded to 8 sublanes)
        + 6 * 8 * 4            # (1, TW) f32 intermediates (padded to 8 sublanes)
    )
    vmem_block_budget = 28 * 1024 * 1024
    tw_vmem = (vmem_block_budget // per_lane_bytes) // 128 * 128
    # No extra benefit past ~8 MiB of real HBM traffic per block.
    tw_traffic = (8 * 1024 * 1024 // max(1, C * itemsize)) // 128 * 128
    hw_round = ((HW + 127) // 128) * 128
    tw = max(128, min(tw_vmem, tw_traffic, hw_round))
    num_tiles = pl.cdiv(HW, tw)
    # NOTE: for very large C the tile shrinks and the per-class strided DMA
    # segments (tw * itemsize) get shorter, but the block itself stays multiple
    # MiB so the per-step overhead remains amortized.

    loss_parts, w_parts = pl.pallas_call(
        functools.partial(_wce_kernel, HW),
        out_shape=(
            jax.ShapeDtypeStruct((N, num_tiles, 1, 1), jnp.float32),
            jax.ShapeDtypeStruct((N, num_tiles, 1, 1), jnp.float32),
        ),
        grid_spec=pltpu.PrefetchScalarGridSpec(
            num_scalar_prefetch=0,
            # Tile axis first: the megacore (v7x) splits the leading parallel
            # axis, so both TensorCores stay busy even when N is 1-2.
            grid=(num_tiles, N),
            in_specs=[
                pl.BlockSpec((1, C, tw), lambda t, n: (n, 0, t)),
                pl.BlockSpec((1, 1, tw), lambda t, n: (n, 0, t)),
                pl.BlockSpec((C, 1), lambda t, n: (0, 0)),
            ],
            out_specs=[
                pl.BlockSpec((1, 1, 1, 1), lambda t, n: (n, t, 0, 0)),
                pl.BlockSpec((1, 1, 1, 1), lambda t, n: (n, t, 0, 0)),
            ],
        ),
        compiler_params=pltpu.CompilerParams(
            dimension_semantics=("parallel", "parallel"),
            vmem_limit_bytes=48 * 1024 * 1024,
        ),
    )(logits_3d, tgt_3d, w_2d)

    # Final reduction in JAX (keeps both grid axes parallel; also avoids a
    # long sequential f32 accumulation).  sum(w)=0 -> NaN, matching PyTorch.
    return jnp.sum(loss_parts) / jnp.sum(w_parts)


def weighted_cross_entropy_loss(logit, target, weight=None):
    """logit: (N, C, H, W), target: (N, H, W) int, weight: (C,) or None.

    Returns the scalar loss of
    nn.CrossEntropyLoss(weight=weight, reduction='mean')(logit, target).
    """
    if weight is None:
        weight = jnp.ones((logit.shape[1],), dtype=jnp.float32)
    weight = jnp.asarray(weight, dtype=jnp.float32)
    return _wce_impl(logit, target, weight)


def _reference_loss(logit, target, weight):
    # Pure-JAX reference of nn.CrossEntropyLoss(weight, reduction='mean').
    N, C, H, W = logit.shape
    x = jnp.transpose(logit, (0, 2, 3, 1)).reshape(-1, C).astype(jnp.float32)
    t = target.reshape(-1).astype(jnp.int32)
    logz = jax.scipy.special.logsumexp(x, axis=-1)
    nll = logz - jnp.take_along_axis(x, t[:, None], axis=-1)[:, 0]
    w = weight[t]
    return jnp.sum(w * nll) / jnp.sum(w)


if __name__ == "__main__":
    key = jax.random.PRNGKey(0)
    k1, k2, k3, k4 = jax.random.split(key, 4)

    # Case 1: aligned spatial extent (HW multiple of 128 -> mask compiled away).
    N, C, H, W = 2, 4, 16, 16
    logit = jax.random.normal(k1, (N, C, H, W), dtype=jnp.float32)
    target = jax.random.randint(k2, (N, H, W), 0, C, dtype=jnp.int32)
    weight = jnp.array([0.5, 1.0, 1.5, 2.0], dtype=jnp.float32)

    loss = jax.block_until_ready(weighted_cross_entropy_loss(logit, target, weight))
    ref = jax.block_until_ready(_reference_loss(logit, target, weight))
    assert jnp.allclose(loss, ref, rtol=1e-5, atol=1e-5), (loss, ref)

    # Case 2: ragged spatial extent (HW=35, exercises the lane-mask path) and
    # no explicit weight (uniform weights == plain mean CE).
    N2, C2, H2, W2 = 2, 6, 5, 7
    logit2 = jax.random.normal(k3, (N2, C2, H2, W2), dtype=jnp.float32)
    target2 = jax.random.randint(k4, (N2, H2, W2), 0, C2, dtype=jnp.int32)
    ones = jnp.ones((C2,), dtype=jnp.float32)

    loss2 = jax.block_until_ready(weighted_cross_entropy_loss(logit2, target2, None))
    ref2 = jax.block_until_ready(_reference_loss(logit2, target2, ones))
    assert jnp.allclose(loss2, ref2, rtol=1e-5, atol=1e-5), (loss2, ref2)

    print("KERNEL_OK")
</pallas_src>

<mosaic_0001>
module attributes {stable_mosaic.version = 11 : i64} {
  func.func @_wce_kernel(%arg0: i32, %arg1: i32, %arg2: memref<1x4x256xf32, #tpu.memory_space<vmem>>, %arg3: memref<1x1x256xi32, #tpu.memory_space<vmem>>, %arg4: memref<4x1xf32, #tpu.memory_space<vmem>>, %arg5: memref<1x1x1x1xf32, #tpu.memory_space<vmem>>, %arg6: memref<1x1x1x1xf32, #tpu.memory_space<vmem>>) attributes {dimension_semantics = [#tpu.dimension_semantics<parallel>, #tpu.dimension_semantics<parallel>], iteration_bounds = array<i64: 1, 2>, scalar_prefetch = 0 : i64, scratch_operands = 0 : i64, tpu.core_type = #tpu.core_type<tc>, window_params = [{transform_indices = @transform_0, window_bounds = array<i64: 1, 4, 256>}, {transform_indices = @transform_1, window_bounds = array<i64: 1, 1, 256>}, {pipeline_mode = #tpu.pipeline_mode<synchronous>, transform_indices = @transform_2, window_bounds = array<i64: 4, 1>}, {transform_indices = @transform_3, window_bounds = array<i64: 1, 1, 1, 1>}, {transform_indices = @transform_4, window_bounds = array<i64: 1, 1, 1, 1>}]} {
    %c0 = arith.constant 0 : index
    %c0_0 = arith.constant 0 : index
    %c0_1 = arith.constant 0 : index
    %0 = vector.load %arg2[%c0, %c0_0, %c0_1] : memref<1x4x256xf32, #tpu.memory_space<vmem>>, vector<1x4x256xf32>
    %1 = vector.shape_cast %0 : vector<1x4x256xf32> to vector<4x256xf32>
    %c0_2 = arith.constant 0 : index
    %c0_3 = arith.constant 0 : index
    %c0_4 = arith.constant 0 : index
    %2 = vector.load %arg3[%c0_2, %c0_3, %c0_4] : memref<1x1x256xi32, #tpu.memory_space<vmem>>, vector<1x1x256xi32>
    %3 = vector.shape_cast %2 : vector<1x1x256xi32> to vector<1x256xi32>
    %c0_5 = arith.constant 0 : index
    %c0_6 = arith.constant 0 : index
    %4 = vector.load %arg4[%c0_5, %c0_6] : memref<4x1xf32, #tpu.memory_space<vmem>>, vector<4x1xf32>
    %cst = arith.constant dense<0xFF800000> : vector<256xf32>
    %5 = vector.multi_reduction <maximumf>, %1, %cst [0] : vector<4x256xf32> to vector<256xf32>
    %6 = vector.shape_cast %5 : vector<256xf32> to vector<1x256xf32>
    %7 = vector.broadcast %6 : vector<1x256xf32> to vector<4x256xf32>
    %8 = arith.subf %1, %7 : vector<4x256xf32>
    %9 = math.exp %8 : vector<4x256xf32>
    %cst_7 = arith.constant dense<0.000000e+00> : vector<256xf32>
    %10 = vector.multi_reduction <add>, %9, %cst_7 [0] : vector<4x256xf32> to vector<256xf32>
    %11 = vector.shape_cast %10 : vector<256xf32> to vector<1x256xf32>
    %12 = math.log %11 : vector<1x256xf32>
    %13 = arith.addf %12, %6 : vector<1x256xf32>
    %14 = tpu.iota {dimensions = array<i32: 0>} : vector<4x256xi32>
    %15 = vector.broadcast %3 : vector<1x256xi32> to vector<4x256xi32>
    %16 = arith.cmpi eq, %14, %15 : vector<4x256xi32>
    %cst_8 = arith.constant 0.000000e+00 : f32
    %17 = vector.broadcast %cst_8 : f32 to vector<4x256xf32>
    %18 = arith.select %16, %1, %17 : vector<4x256xi1>, vector<4x256xf32>
    %cst_9 = arith.constant dense<0.000000e+00> : vector<256xf32>
    %19 = vector.multi_reduction <add>, %18, %cst_9 [0] : vector<4x256xf32> to vector<256xf32>
    %20 = vector.shape_cast %19 : vector<256xf32> to vector<1x256xf32>
    %cst_10 = arith.constant 0.000000e+00 : f32
    %21 = vector.shape_cast %4 : vector<4x1xf32> to vector<4x1xf32>
    %22 = vector.broadcast %21 : vector<4x1xf32> to vector<4x256xf32>
    %23 = vector.broadcast %cst_10 : f32 to vector<4x256xf32>
    %24 = arith.select %16, %22, %23 : vector<4x256xi1>, vector<4x256xf32>
    %cst_11 = arith.constant dense<0.000000e+00> : vector<256xf32>
    %25 = vector.multi_reduction <add>, %24, %cst_11 [0] : vector<4x256xf32> to vector<256xf32>
    %26 = vector.shape_cast %25 : vector<256xf32> to vector<1x256xf32>
    %27 = arith.subf %13, %20 : vector<1x256xf32>
    %28 = arith.mulf %26, %27 : vector<1x256xf32>
    %cst_12 = arith.constant dense<0.000000e+00> : vector<1xf32>
    %29 = vector.multi_reduction <add>, %28, %cst_12 [1] : vector<1x256xf32> to vector<1xf32>
    %30 = vector.shape_cast %29 : vector<1xf32> to vector<1x1xf32>
    %31 = vector.shape_cast %30 : vector<1x1xf32> to vector<1x1x1x1xf32>
    %c0_13 = arith.constant 0 : index
    %c0_14 = arith.constant 0 : index
    %c0_15 = arith.constant 0 : index
    %c0_16 = arith.constant 0 : index
    %32 = vector.load %arg5[%c0_13, %c0_14, %c0_15, %c0_16] : memref<1x1x1x1xf32, #tpu.memory_space<vmem>>, vector<1x1x1x1xf32>
    tpu.vector_store %arg5[%c0_13, %c0_14, %c0_15, %c0_16], %31 {strides = array<i32>} : memref<1x1x1x1xf32, #tpu.memory_space<vmem>>, vector<1x1x1x1xf32>,
    %cst_17 = arith.constant dense<0.000000e+00> : vector<1xf32>
    %33 = vector.multi_reduction <add>, %26, %cst_17 [1] : vector<1x256xf32> to vector<1xf32>
    %34 = vector.shape_cast %33 : vector<1xf32> to vector<1x1xf32>
    %35 = vector.shape_cast %34 : vector<1x1xf32> to vector<1x1x1x1xf32>
    %c0_18 = arith.constant 0 : index
    %c0_19 = arith.constant 0 : index
    %c0_20 = arith.constant 0 : index
    %c0_21 = arith.constant 0 : index
    %36 = vector.load %arg6[%c0_18, %c0_19, %c0_20, %c0_21] : memref<1x1x1x1xf32, #tpu.memory_space<vmem>>, vector<1x1x1x1xf32>
    tpu.vector_store %arg6[%c0_18, %c0_19, %c0_20, %c0_21], %35 {strides = array<i32>} : memref<1x1x1x1xf32, #tpu.memory_space<vmem>>, vector<1x1x1x1xf32>,
    return
  }
  func.func @transform_0(%arg0: i32, %arg1: i32) -> (i32, i32, i32) {
    %c0_i32 = arith.constant 0 : i32
    %c0_i32_0 = arith.constant 0 : i32
    return %arg1, %c0_i32, %arg0 : i32, i32, i32
  }
  func.func @transform_1(%arg0: i32, %arg1: i32) -> (i32, i32, i32) {
    %c0_i32 = arith.constant 0 : i32
    %c0_i32_0 = arith.constant 0 : i32
    return %arg1, %c0_i32, %arg0 : i32, i32, i32
  }
  func.func @transform_2(%arg0: i32, %arg1: i32) -> (i32, i32) {
    %c0_i32 = arith.constant 0 : i32
    %c0_i32_0 = arith.constant 0 : i32
    %c0_i32_1 = arith.constant 0 : i32
    return %c0_i32, %c0_i32_0 : i32, i32
  }
  func.func @transform_3(%arg0: i32, %arg1: i32) -> (i32, i32, i32, i32) {
    %c0_i32 = arith.constant 0 : i32
    %c0_i32_0 = arith.constant 0 : i32
    %c0_i32_1 = arith.constant 0 : i32
    return %arg1, %arg0, %c0_i32, %c0_i32_0 : i32, i32, i32, i32
  }
  func.func @transform_4(%arg0: i32, %arg1: i32) -> (i32, i32, i32, i32) {
    %c0_i32 = arith.constant 0 : i32
    %c0_i32_0 = arith.constant 0 : i32
    %c0_i32_1 = arith.constant 0 : i32
    return %arg1, %arg0, %c0_i32, %c0_i32_0 : i32, i32, i32, i32
  }
}

</mosaic_0001>

<llo_original>
// kernel: _wce_impl.1
$region0: #{_wce_impl.1}
  #allocation0 [shape = 'u32[]', space=smem, size = 0x4, offset = 0x4, fixed_abs, tag = 'smem constant byte address 0x4 - core index']
  #allocation1 [shape = 'u32[144,128]{1,0:T(1,128)}', space=vmem, size = 0x12000, scoped, tag = 'internal scratch']
  %s0 = inlined_call_operand.vmem [shape: f32[2,4,256], index: 0, kind: input, shape index: {}]
  %s1 = inlined_call_operand.vmem [shape: s32[2,1,256], index: 1, kind: input, shape index: {}]
  %s2 = inlined_call_operand.vmem [shape: f32[4,1], index: 2, kind: input, shape index: {}]
  %s3 = inlined_call_operand.vmem [shape: f32[2,1,1,1], index: 3, kind: output, shape index: {0}]
  %s4 = inlined_call_operand.vmem [shape: f32[2,1,1,1], index: 4, kind: output, shape index: {1}]
  %5 = xla_tuple %s3, %s4
  %s6 = sld [smem:[#allocation0]]
  $region53: #{_wce_impl.1} parent=0
    _
  %s8 = ssub.s32 1, %s6
  %s9 = scalar_select 0, %s8, %s6
  loop: start=0, step=1, limit=4
  $region2: #{_wce_impl.1} parent=0 // loop_pre_header
    _
  $region3: #{_wce_impl.1} parent=0 // loop_header
    %s11 = sphi 0, %s15
    %p12 = scmp.ge.s32.totalorder %s11, 4
    %s18 = sphi 0, %s30
    %s19 = sphi 0, %s26
    %s20 = sphi 0, %s18
    %s21 = sphi 0, %s19
    %s22 = sphi 0, %s20
    %s23 = sphi 0, %s21
    %s35 = sphi 0, %s37
    %s38 = sphi 0, %s35
    %s39 = sphi 0, %s38
    %s55 = sphi 0, %s39
    %s63 = sphi 0, %s65
    %s66 = sphi 0, %s63
    %s67 = sphi 0, %s66
    %s83 = sphi 0, %s67
    %s87 = sphi 0, %s87
    %s89 = sphi 0, %s87
    %s90 = sphi 0, %s89
    %s104 = sphi 0, %s90
    %s112 = sphi 0, %s114
    %s115 = sphi 0, %s112
    %s116 = sphi 0, %s115
    %s132 = sphi 0, %s116
    %s140 = sphi 0, %s142
    %s143 = sphi 0, %s140
    %s144 = sphi 0, %s143
    %s160 = sphi 0, %s144
  $region4: #{_wce_impl.1} parent=0 // loop_header_branch
    %14 = sbr.rel (%p12) target = $region8
  $region5: #{_wce_impl.1} parent=0 // loop_body
    %s16 = ssub.s32 %s11, 1
    %s17 = ssub.s32 %s11, 2
    %s24 = sadd.s32 1, %s19
    %p25 = scmp.ge.s32.totalorder %s24, 2
    %s26 = scalar_select %p25, 0, %s24
    %s27 = sadd.s32 1, %s18
    %s28 = scalar_select %p25, %s27, %s18
    %p29 = scmp.ge.s32.totalorder %s28, 1
    %s30 = scalar_select %p29, 0, %s28
    %s31 = ssub.s32 %s19, %s26
    %s32 = ssub.s32 %s18, %s30
    %s33 = sor.u32 %s31, %s32
    %p34 = scmp.eq.s32.totalorder %s33, 0
    %s36 = sadd.s32 %s35, 1
    %s37 = scalar_select %p34, %s35, %s36
    %p40 = pneg %p34
    %p41 = scmp.eq.s32.totalorder %s11, 1
    %p42 = por %p40, %p41
    %p43 = scmp.ne.s32.totalorder %s35, %s38
    %p44 = scmp.eq.s32.totalorder %s11, 0
    %p45 = por %p43, %p44
    %p46 = scmp.ne.s32.totalorder %s35, %s38
    %p47 = scmp.eq.s32.totalorder %s16, 1
    %p48 = por %p46, %p47
    %p49 = scmp.ne.s32.totalorder %s38, %s39
    %p50 = scmp.eq.s32.totalorder %s16, 0
    %p51 = por %p49, %p50
    %p52 = scmp.ne.s32.totalorder %s38, %s39
    %p53 = scmp.eq.s32.totalorder %s17, 1
    %p54 = por %p52, %p53
    %p56 = scmp.ne.s32.totalorder %s39, %s55
    %p57 = scmp.eq.s32.totalorder %s17, 0
    %p58 = por %p56, %p57
    %s59 = ssub.s32 %s19, %s26
    %s60 = ssub.s32 %s18, %s30
    %s61 = sor.u32 %s59, %s60
    %p62 = scmp.eq.s32.totalorder %s61, 0
    %s64 = sadd.s32 %s63, 1
    %s65 = scalar_select %p62, %s63, %s64
    %p68 = pneg %p62
    %p69 = scmp.eq.s32.totalorder %s11, 1
    %p70 = por %p68, %p69
    %p71 = scmp.ne.s32.totalorder %s63, %s66
    %p72 = scmp.eq.s32.totalorder %s11, 0
    %p73 = por %p71, %p72
    %p74 = scmp.ne.s32.totalorder %s63, %s66
    %p75 = scmp.eq.s32.totalorder %s16, 1
    %p76 = por %p74, %p75
    %p77 = scmp.ne.s32.totalorder %s66, %s67
    %p78 = scmp.eq.s32.totalorder %s16, 0
    %p79 = por %p77, %p78
    %p80 = scmp.ne.s32.totalorder %s66, %s67
    %p81 = scmp.eq.s32.totalorder %s17, 1
    %p82 = por %p80, %p81
    %p84 = scmp.ne.s32.totalorder %s67, %s83
    %p85 = scmp.eq.s32.totalorder %s17, 0
    %p86 = por %p84, %p85
    %s88 = sadd.s32 %s87, 1
    %p91 = scmp.eq.s32.totalorder %s11, 1
    %p92 = scmp.ne.s32.totalorder %s87, %s89
    %p93 = scmp.eq.s32.totalorder %s11, 0
    %p94 = por %p92, %p93
    %p95 = scmp.ne.s32.totalorder %s87, %s89
    %p96 = scmp.eq.s32.totalorder %s16, 1
    %p97 = por %p95, %p96
    %p98 = scmp.ne.s32.totalorder %s89, %s90
    %p99 = scmp.eq.s32.totalorder %s16, 0
    %p100 = por %p98, %p99
    %p101 = scmp.ne.s32.totalorder %s89, %s90
    %p102 = scmp.eq.s32.totalorder %s17, 1
    %p103 = por %p101, %p102
    %p105 = scmp.ne.s32.totalorder %s90, %s104
    %p106 = scmp.eq.s32.totalorder %s17, 0
    %p107 = por %p105, %p106
    %s108 = ssub.s32 %s19, %s26
    %s109 = ssub.s32 %s18, %s30
    %s110 = sor.u32 %s108, %s109
    %p111 = scmp.eq.s32.totalorder %s110, 0
    %s113 = sadd.s32 %s112, 1
    %s114 = scalar_select %p111, %s112, %s113
    %p117 = pneg %p111
    %p118 = scmp.eq.s32.totalorder %s11, 1
    %p119 = por %p117, %p118
    %p120 = scmp.ne.s32.totalorder %s112, %s115
    %p121 = scmp.eq.s32.totalorder %s11, 0
    %p122 = por %p120, %p121
    %p123 = scmp.ne.s32.totalorder %s112, %s115
    %p124 = scmp.eq.s32.totalorder %s16, 1
    %p125 = por %p123, %p124
    %p126 = scmp.ne.s32.totalorder %s115, %s116
    %p127 = scmp.eq.s32.totalorder %s16, 0
    %p128 = por %p126, %p127
    %p129 = scmp.ne.s32.totalorder %s115, %s116
    %p130 = scmp.eq.s32.totalorder %s17, 1
    %p131 = por %p129, %p130
    %p133 = scmp.ne.s32.totalorder %s116, %s132
    %p134 = scmp.eq.s32.totalorder %s17, 0
    %p135 = por %p133, %p134
    %s136 = ssub.s32 %s19, %s26
    %s137 = ssub.s32 %s18, %s30
    %s138 = sor.u32 %s136, %s137
    %p139 = scmp.eq.s32.totalorder %s138, 0
    %s141 = sadd.s32 %s140, 1
    %s142 = scalar_select %p139, %s140, %s141
    %p145 = pneg %p139
    %p146 = scmp.eq.s32.totalorder %s11, 1
    %p147 = por %p145, %p146
    %p148 = scmp.ne.s32.totalorder %s140, %s143
    %p149 = scmp.eq.s32.totalorder %s11, 0
    %p150 = por %p148, %p149
    %p151 = scmp.ne.s32.totalorder %s140, %s143
    %p152 = scmp.eq.s32.totalorder %s16, 1
    %p153 = por %p151, %p152
    %p154 = scmp.ne.s32.totalorder %s143, %s144
    %p155 = scmp.eq.s32.totalorder %s16, 0
    %p156 = por %p154, %p155
    %p157 = scmp.ne.s32.totalorder %s143, %s144
    %p158 = scmp.eq.s32.totalorder %s17, 1
    %p159 = por %p157, %p158
    %p161 = scmp.ne.s32.totalorder %s144, %s160
    %p162 = scmp.eq.s32.totalorder %s17, 0
    %p163 = por %p161, %p162
    %p164 = scmp.le.s32.totalorder 1, %s11
    %p165 = scmp.lt.s32.totalorder %s11, 3
    %p166 = pnand %p164, %p165
    %p167 = pneg %p166
    // Predicated region
    $region9: #{_wce_impl.1} parent=5 // pred_check
      _
    $region10: #{_wce_impl.1} parent=5 // pred_check_branch
      %169 = sbr.rel (%p166) target = $region12
    $region11: #{_wce_impl.1} parent=5 // pred_region
      %s170 = ssub.s32 %s11, 1
      // Predicated region
      $region13: #{_wce_impl.1} parent=11 // pred_check
        %p171 = pneg %p100
      $region14: #{_wce_impl.1} parent=11 // pred_check_branch
        %173 = sbr.rel (%p171) target = $region16
      $region15: #{_wce_impl.1} parent=11 // pred_region
        _
      $region16: #{_wce_impl.1} parent=11 // pred_fallthru
        _
    $region12: #{_wce_impl.1} parent=5 // pred_fallthru
      _
    %p174 = scmp.lt.s32.totalorder %s11, 2
    // Predicated region
    $region17: #{_wce_impl.1} parent=5 // pred_check
      %p175 = pneg %p174
    $region18: #{_wce_impl.1} parent=5 // pred_check_branch
      %177 = sbr.rel (%p175) target = $region20
    $region19: #{_wce_impl.1} parent=5 // pred_region
      // Predicated region
      $region21: #{_wce_impl.1} parent=19 // pred_check
        %p178 = pneg %p45
      $region22: #{_wce_impl.1} parent=19 // pred_check_branch
        %180 = sbr.rel (%p178) target = $region24
      $region23: #{_wce_impl.1} parent=19 // pred_region
        %s181 = smul.u32 2, %s18
        %p182 = scmp.lt.s32.totalorder %s19, 1
        %s183 = scalar_select %p182, %s19, 1
        %p184 = scmp.lt.s32.totalorder %s181, 1
        %s185 = scalar_select %p184, %s181, 1
        %s186 = smul.addr %s183, 2
        %s187 = sadd.s32 %s185, %s186
        %s188 = smul.addr %s187, 4
        %s189 = scalar_lea.vmem %s0, %s188
        %s190 = smul.u32 2, %s18
      $region24: #{_wce_impl.1} parent=19 // pred_fallthru
        _
      // Predicated region
      $region25: #{_wce_impl.1} parent=19 // pred_check
        %p191 = pneg %p73
      $region26: #{_wce_impl.1} parent=19 // pred_check_branch
        %193 = sbr.rel (%p191) target = $region28
      $region27: #{_wce_impl.1} parent=19 // pred_region
        %s194 = smul.u32 2, %s18
        %p195 = scmp.lt.s32.totalorder %s19, 1
        %s196 = scalar_select %p195, %s19, 1
        %p197 = scmp.lt.s32.totalorder %s194, 1
        %s198 = scalar_select %p197, %s194, 1
        %s199 = smul.addr %s196, 2
        %s200 = sadd.s32 %s198, %s199
        %s201 = scalar_lea.vmem %s1, %s200
        %s202 = smul.u32 2, %s18
      $region28: #{_wce_impl.1} parent=19 // pred_fallthru
        _
    $region20: #{_wce_impl.1} parent=5 // pred_fallthru
      _
    %p203 = scmp.le.s32.totalorder 1, %s11
    %p204 = scmp.lt.s32.totalorder %s11, 3
    %p205 = pnand %p203, %p204
    %p206 = pneg %p205
    // Predicated region
    $region29: #{_wce_impl.1} parent=5 // pred_check
      _
    $region30: #{_wce_impl.1} parent=5 // pred_check_branch
      %208 = sbr.rel (%p205) target = $region32
    $region31: #{_wce_impl.1} parent=5 // pred_region
      %s209 = ssub.s32 %s11, 1
      %s210 = smul.u32 2, %s20
      %p211 = scmp.lt.s32.totalorder %s21, 1
      %s212 = scalar_select %p211, %s21, 1
      %p213 = scmp.lt.s32.totalorder %s210, 1
      %s214 = scalar_select %p213, %s210, 1
      %s215 = smul.addr %s212, 2
      %s216 = sadd.s32 %s214, %s215
      %s217 = smul.addr %s216, 4
      %s218 = scalar_lea.vmem %s0, %s217
      %p219 = pneg %p51
      %p220 = pneg %p48
      %s221 = smul.u32 2, %s20
      %p222 = scmp.lt.s32.totalorder %s21, 1
      %s223 = scalar_select %p222, %s21, 1
      %p224 = scmp.lt.s32.totalorder %s221, 1
      %s225 = scalar_select %p224, %s221, 1
      %s226 = smul.addr %s223, 2
      %s227 = sadd.s32 %s225, %s226
      %s228 = scalar_lea.vmem %s1, %s227
      %p229 = pneg %p79
      %p230 = pneg %p76
      %p231 = pneg %p100
      %p232 = pneg %p97
      %p233 = pneg %p128
      %p234 = pneg %p125
      %p235 = scmp.lt.s32.totalorder %s21, 1
      %s236 = scalar_select %p235, %s21, 1
      %p237 = scmp.lt.s32.totalorder %s20, 0
      %s238 = scalar_select %p237, %s20, 0
      %s239 = sadd.s32 %s238, %s236
      %s240 = scalar_lea.vmem %s3, %s239
      %p241 = pneg %p156
      %p242 = pneg %p153
      %p243 = scmp.lt.s32.totalorder %s21, 1
      %s244 = scalar_select %p243, %s21, 1
      %p245 = scmp.lt.s32.totalorder %s20, 0
      %s246 = scalar_select %p245, %s20, 0
      %s247 = sadd.s32 %s246, %s244
      %s248 = scalar_lea.vmem %s4, %s247
      %s249 = smul.u32 2, %s20
      %p250 = scmp.lt.s32.totalorder %s21, 1
      %s251 = scalar_select %p250, %s21, 1
      %p252 = scmp.lt.s32.totalorder %s249, 1
      %s253 = scalar_select %p252, %s249, 1
      %s254 = smul.addr %s251, 2
      %s255 = sadd.s32 %s253, %s254
      %s256 = smul.addr %s255, 4
      %s257 = scalar_lea.vmem %s0, %s256
      %s258 = smul.u32 2, %s20
      %s259 = smul.u32 2, %s20
      %p260 = scmp.lt.s32.totalorder %s21, 1
      %s261 = scalar_select %p260, %s21, 1
      %p262 = scmp.lt.s32.totalorder %s259, 1
      %s263 = scalar_select %p262, %s259, 1
      %s264 = smul.addr %s261, 2
      %s265 = sadd.s32 %s263, %s264
      %s266 = scalar_lea.vmem %s1, %s265
      %s267 = smul.u32 2, %s20
      %p268 = scmp.lt.s32.totalorder %s21, 1
      %s269 = scalar_select %p268, %s21, 1
      %p270 = scmp.lt.s32.totalorder %s20, 0
      %s271 = scalar_select %p270, %s20, 0
      %s272 = sadd.s32 %s271, %s269
      %s273 = scalar_lea.vmem %s3, %s272
      %p274 = scmp.lt.s32.totalorder %s21, 1
      %s275 = scalar_select %p274, %s21, 1
      %p276 = scmp.lt.s32.totalorder %s20, 0
      %s277 = scalar_select %p276, %s20, 0
      %s278 = sadd.s32 %s277, %s275
      %s279 = scalar_lea.vmem %s4, %s278
      %v280 = vld [vmem:[%s257] sm:$0xff]
      %v281 = vld [vmem:[%s266] sm:$0x3]
      %v282 = vld [vmem:[%s2] sm:$0xf]
      %v284 = vcombine.high %v280, %v280
      %vm286 = vcmask 1043456
      %v287 = vsel %vm286, %v280, -inf
      %v288 = vrot.slane %v287, 4
      %v289 = vmax.f32 %v287, %v288
      %v290 = vrot.slane %v289, 2
      %v291 = vmax.f32 %v289, %v290
      %v292 = vrot.slane %v291, 1
      %v293 = vmax.f32 %v291, %v292
      %v294 = vsel %vm286, %v284, -inf
      %v295 = vrot.slane %v294, 4
      %v296 = vmax.f32 %v294, %v295
      %v297 = vrot.slane %v296, 2
      %v298 = vmax.f32 %v296, %v297
      %v299 = vrot.slane %v298, 1
      %v300 = vmax.f32 %v298, %v299
      %v303 = vcombine.low %v293, %v300
      %v305 = vsub.f32 %v280, %v303
      %v306 = vmul.f32 %v305, 1.442695
      %v307 = vpow.pop %v306
      %v309 = vcombine.high %v307, %v307
      %v311 = vsel %vm286, %v307, 0.0
      %v312 = vrot.slane %v311, 4
      %v313 = vadd.f32 %v311, %v312
      %v314 = vrot.slane %v313, 2
      %v315 = vadd.f32 %v313, %v314
      %v316 = vrot.slane %v315, 1
      %v317 = vadd.f32 %v315, %v316
      %v318 = vsel %vm286, %v309, 0.0
      %v319 = vrot.slane %v318, 4
      %v320 = vadd.f32 %v318, %v319
      %v321 = vrot.slane %v320, 2
      %v322 = vadd.f32 %v320, %v321
      %v323 = vrot.slane %v322, 1
      %v324 = vadd.f32 %v322, %v323
      %v325 = vlog2.pop %v317
      %v326 = vmul.f32 %v325, 0.6931472
      %v327 = vlog2.pop %v324
      %v328 = vmul.f32 %v327, 0.6931472
      %v329 = vadd.f32 %v326, %v293
      %v330 = vadd.f32 %v328, %v300
      %v331 = vlaneseq
      %v332 = vshrl.u32 %v331, 7
      %v333 = vlaneseq
      %v334 = vshrl.u32 %v333, 7
      %v335 = vsub.s32 0, %v334
      %v336 = vrot.slane %v281, %v335
      %v337 = vlaneseq
      %v338 = vshrl.u32 %v337, 7
      %v339 = vsub.s32 1, %v338
      %v340 = vrot.slane %v281, %v339
      %vm341 = vcmp.eq.s32.totalorder %v332, %v336
      %vm342 = vcmp.eq.s32.totalorder %v332, %v340
      %v343 = vsel %vm341, %v280, 0.0
      %v344 = vsel %vm342, %v284, 0.0
      %v345 = vsel %vm286, %v343, 0.0
      %v346 = vrot.slane %v345, 4
      %v347 = vadd.f32 %v345, %v346
      %v348 = vrot.slane %v347, 2
      %v349 = vadd.f32 %v347, %v348
      %v350 = vrot.slane %v349, 1
      %v351 = vadd.f32 %v349, %v350
      %v352 = vsel %vm286, %v344, 0.0
      %v353 = vrot.slane %v352, 4
      %v354 = vadd.f32 %v352, %v353
      %v355 = vrot.slane %v354, 2
      %v356 = vadd.f32 %v354, %v355
      %v357 = vrot.slane %v356, 1
      %v358 = vadd.f32 %v356, %v357
      %360 = vset.pattern.permute.xlu0 0
      %361 = vperm.xlu0 %360, %v282
      %v362 = vpop.permute.xlu0 %361
      %v364 = vsel %vm341, %v362, 0.0
      %v365 = vsel %vm342, %v362, 0.0
      %v366 = vsel %vm286, %v364, 0.0
      %v367 = vrot.slane %v366, 4
      %v368 = vadd.f32 %v366, %v367
      %v369 = vrot.slane %v368, 2
      %v370 = vadd.f32 %v368, %v369
      %v371 = vrot.slane %v370, 1
      %v372 = vadd.f32 %v370, %v371
      %v373 = vsel %vm286, %v365, 0.0
      %v374 = vrot.slane %v373, 4
      %v375 = vadd.f32 %v373, %v374
      %v376 = vrot.slane %v375, 2
      %v377 = vadd.f32 %v375, %v376
      %v378 = vrot.slane %v377, 1
      %v379 = vadd.f32 %v377, %v378
      %v380 = vsub.f32 %v329, %v351
      %v381 = vsub.f32 %v330, %v358
      %v382 = vmul.f32 %v372, %v380
      %v383 = vmul.f32 %v379, %v381
      %v384 = vadd.f32 %v382, %v383
      %385 = vadd.xlane.f32.xlu0 %v384
      %v386 = vpop.xlane.xlu0 %385
      %vm387 = vcmask 0
      %388 = vst.msk [vmem:[%s273] sm:$0x1] %vm387, %v386
      %v389 = vadd.f32 %v372, %v379
      %390 = vadd.xlane.f32.xlu0 %v389
      %v391 = vpop.xlane.xlu0 %390
      %392 = vst.msk [vmem:[%s279] sm:$0x1] %vm387, %v391
      %p393 = scmp.lt.s32.totalorder %s21, 1
      %s394 = scalar_select %p393, %s21, 1
      %p395 = scmp.lt.s32.totalorder %s20, 0
      %s396 = scalar_select %p395, %s20, 0
      %s397 = sadd.s32 %s396, %s394
      %s398 = scalar_lea.vmem %s3, %s397
      %p399 = scmp.lt.s32.totalorder %s21, 1
      %s400 = scalar_select %p399, %s21, 1
      %p401 = scmp.lt.s32.totalorder %s20, 0
      %s402 = scalar_select %p401, %s20, 0
      %s403 = sadd.s32 %s402, %s400
      %s404 = scalar_lea.vmem %s4, %s403
      // Predicated region
      $region33: #{_wce_impl.1} parent=31 // pred_check
        %p405 = pneg %p125
      $region34: #{_wce_impl.1} parent=31 // pred_check_branch
        %407 = sbr.rel (%p405) target = $region36
      $region35: #{_wce_impl.1} parent=31 // pred_region
        _
      $region36: #{_wce_impl.1} parent=31 // pred_fallthru
        _
      // Predicated region
      $region37: #{_wce_impl.1} parent=31 // pred_check
        %p408 = pneg %p153
      $region38: #{_wce_impl.1} parent=31 // pred_check_branch
        %410 = sbr.rel (%p408) target = $region40
      $region39: #{_wce_impl.1} parent=31 // pred_region
        _
      $region40: #{_wce_impl.1} parent=31 // pred_fallthru
        _
    $region32: #{_wce_impl.1} parent=5 // pred_fallthru
      _
    %p411 = scmp.le.s32.totalorder 2, %s11
    // Predicated region
    $region41: #{_wce_impl.1} parent=5 // pred_check
      %p412 = pneg %p411
    $region42: #{_wce_impl.1} parent=5 // pred_check_branch
      %414 = sbr.rel (%p412) target = $region44
    $region43: #{_wce_impl.1} parent=5 // pred_region
      %s415 = ssub.s32 %s11, 2
      // Predicated region
      $region45: #{_wce_impl.1} parent=43 // pred_check
        %p416 = pneg %p131
      $region46: #{_wce_impl.1} parent=43 // pred_check_branch
        %418 = sbr.rel (%p416) target = $region48
      $region47: #{_wce_impl.1} parent=43 // pred_region
        %p419 = scmp.lt.s32.totalorder %s23, 1
        %s420 = scalar_select %p419, %s23, 1
        %p421 = scmp.lt.s32.totalorder %s22, 0
        %s422 = scalar_select %p421, %s22, 0
        %s423 = sadd.s32 %s422, %s420
        %s424 = scalar_lea.vmem %s3, %s423
      $region48: #{_wce_impl.1} parent=43 // pred_fallthru
        _
      // Predicated region
      $region49: #{_wce_impl.1} parent=43 // pred_check
        %p425 = pneg %p159
      $region50: #{_wce_impl.1} parent=43 // pred_check_branch
        %427 = sbr.rel (%p425) target = $region52
      $region51: #{_wce_impl.1} parent=43 // pred_region
        %p428 = scmp.lt.s32.totalorder %s23, 1
        %s429 = scalar_select %p428, %s23, 1
        %p430 = scmp.lt.s32.totalorder %s22, 0
        %s431 = scalar_select %p430, %s22, 0
        %s432 = sadd.s32 %s431, %s429
        %s433 = scalar_lea.vmem %s4, %s432
      $region52: #{_wce_impl.1} parent=43 // pred_fallthru
        _
    $region44: #{_wce_impl.1} parent=5 // pred_fallthru
      _
  $region6: #{_wce_impl.1} parent=0 // loop_footer
    %s15 = sadd.s32 1, %s11
  $region7: #{_wce_impl.1} parent=0 // loop_footer_branch
    %10 = sbr.rel target = $region3
  $region8: #{_wce_impl.1} parent=0 // loop_exit
    _

</llo_original>
